<compile_context>
chip_gen: v7x
topology: tpu7x:2x2x1
jax: 0.10.0
libtpu: 0.0.40
codegen_flags: <defaults>
</compile_context>

<pallas_src>
import functools
import numpy as np
import jax
import jax.numpy as jnp
from jax.experimental import pallas as pl
from jax.experimental.pallas import tpu as pltpu


def _pick_tile(n, target=512):
    """Largest 'nice' row-tile <= target that divides n (fallback: n).

    512 amortizes the ~0.35us per-grid-step overhead on v5e/v6e (128 MiB VMEM);
    use target=256 on v7x (64 MiB VMEM).
    """
    for t in (512, 256, 128, 64, 32, 16, 8):
        if t <= target and t <= n and n % t == 0:
            return t
    return n


def _nbytes(shape, dtype):
    return int(np.prod(shape)) * jnp.dtype(dtype).itemsize


def _compiler_params(dim_semantics, pipelined_block_bytes, scratch_bytes=0):
    """CompilerParams with vmem_limit_bytes sized to the block working set.

    Pipelined blocks are double-buffered by the Pallas runtime (hence the 2x);
    add scratch + slack and cap below physical VMEM (128 MiB on v5e/v6e).
    """
    limit = 2 * int(pipelined_block_bytes) + int(scratch_bytes) + (4 << 20)
    limit = min(limit, 96 << 20)
    return pltpu.CompilerParams(
        dimension_semantics=dim_semantics, vmem_limit_bytes=limit)


# ---------------------------------------------------------------------------
# Pallas kernels
# ---------------------------------------------------------------------------

def _linear_kernel(x_ref, w_ref, b_ref, o_ref):
    # o = x @ w_t + b.  w_t is already (din, dout) bf16 (transposed + cast at
    # init), x is cast to bf16 in-kernel (VPU); the MXU accumulates in f32.
    y = jnp.dot(x_ref[...].astype(jnp.bfloat16), w_ref[...],
                preferred_element_type=jnp.float32) + b_ref[...]
    o_ref[...] = y.astype(o_ref.dtype)


def _attn_kernel(q_ref, k_ref, v_ref, o_ref, attn_ref, ctx_scratch,
                 *, scale, n_head, d_k, d_v):
    # Blocks:
    #   q_ref: (1, TQ, H*d_k) f32   k_ref: (1, Lk, H*d_k) bf16
    #   v_ref: (1, Lk, H*d_v) bf16
    #   o_ref: (1, TQ, H*d_v) bf16  attn_ref: (H, 1, TQ, Lk) f32
    #   ctx_scratch: (TQ, H*d_v) f32 VMEM
    # Softmax scale applied ONCE to the whole q tile (then cast to bf16 for the
    # MXU) instead of per-head on each (TQ, Lk) score matrix.
    q_all = (q_ref[0] * scale).astype(jnp.bfloat16)   # (TQ, H*d_k)
    k_all = k_ref[0]                                  # (Lk, H*d_k) bf16
    v_all = v_ref[0]                                  # (Lk, H*d_v) bf16
    for h in range(n_head):                           # static unrolled head loop
        qh = q_all[:, h * d_k:(h + 1) * d_k]          # (TQ, d_k)
        kh = k_all[:, h * d_k:(h + 1) * d_k]          # (Lk, d_k)
        vh = v_all[:, h * d_v:(h + 1) * d_v]          # (Lk, d_v)
        # q @ k^T via dot_general contracting dim 1 with dim 1 (no transpose op).
        s = jax.lax.dot_general(
            qh, kh,
            dimension_numbers=(((1,), (1,)), ((), ())),
            preferred_element_type=jnp.float32,
        )                                             # (TQ, Lk) f32
        s_max = jnp.max(s, axis=-1, keepdims=True)
        p = jnp.exp(s - s_max)
        denom = jnp.sum(p, axis=-1, keepdims=True)
        # Exact normalization (rows sum to 1 to f32 precision) -- matches the
        # PyTorch softmax; approx reciprocal was not accurate enough.
        p = p * (1.0 / denom)
        attn_ref[h, 0, :, :] = p                      # f32 probabilities
        # Per-head context goes straight into a VMEM scratch slice -- no
        # Python-list concat keeping H live (TQ, d_v) tiles in vregs.
        ctx_scratch[:, h * d_v:(h + 1) * d_v] = jnp.dot(
            p.astype(jnp.bfloat16), vh, preferred_element_type=jnp.float32)
    # One lane-dense store of all heads' context (bf16 intermediate).
    o_ref[0] = ctx_scratch[...].astype(o_ref.dtype)


def _fc_residual_layernorm_kernel(x_ref, res_ref, w_ref, b_ref, g_ref, bb_ref,
                                  o_ref):
    # y = ctx @ w_fc_t + b_fc ; (dropout = identity) ; y += residual ; LayerNorm(y)
    # ctx and w_fc are bf16 MXU operands; accumulation and LN math are f32.
    y = jnp.dot(x_ref[...].astype(jnp.bfloat16), w_ref[...],
                preferred_element_type=jnp.float32) + b_ref[...]
    y = y + res_ref[...]
    mean = jnp.mean(y, axis=-1, keepdims=True)
    var = jnp.mean(jnp.square(y - mean), axis=-1, keepdims=True)
    yn = (y - mean) * jax.lax.rsqrt(var + 1e-5)
    o_ref[...] = yn * g_ref[...] + bb_ref[...]


# ---------------------------------------------------------------------------
# Wrappers
# ---------------------------------------------------------------------------

def linear(x, w_t, b, *, out_dtype=jnp.float32, row_tile=512):
    """x: (N, din) f32, w_t: (din, dout) bf16 (pre-transposed), b: (dout,) f32."""
    N, din = x.shape
    dout = w_t.shape[1]
    tm = _pick_tile(N, row_tile)
    block_bytes = (_nbytes((tm, din), x.dtype)
                   + _nbytes((din, dout), w_t.dtype)
                   + _nbytes((1, dout), b.dtype)
                   + _nbytes((tm, dout), out_dtype))
    return pl.pallas_call(
        _linear_kernel,
        out_shape=jax.ShapeDtypeStruct((N, dout), out_dtype),
        grid=(N // tm,),
        in_specs=[
            pl.BlockSpec((tm, din), lambda i: (i, 0)),
            pl.BlockSpec((din, dout), lambda i: (0, 0)),   # weight resident
            pl.BlockSpec((1, dout), lambda i: (0, 0)),     # bias resident
        ],
        out_specs=pl.BlockSpec((tm, dout), lambda i: (i, 0)),
        compiler_params=_compiler_params(("parallel",), block_bytes),
    )(x, w_t, b.reshape(1, dout))


def attention_all_heads(q_p, k_p, v_p, *, n_head, d_k, d_v, temperature,
                        q_tile=512):
    """q_p: (B, Lq, H*d_k) f32, k_p: (B, Lk, H*d_k) bf16, v_p: (B, Lk, H*d_v) bf16.

    Returns:
      ctx:  (B, Lq, H*d_v) bf16  -- heads already in the fc-input layout
      attn: (H, B, Lq, Lk) f32   -- softmax probabilities (head-major)
    """
    B, Lq, _ = q_p.shape
    _, Lk, _ = k_p.shape
    tq = _pick_tile(Lq, q_tile)
    kernel = functools.partial(
        _attn_kernel, scale=1.0 / float(temperature),
        n_head=n_head, d_k=d_k, d_v=d_v)
    block_bytes = (_nbytes((1, tq, n_head * d_k), q_p.dtype)
                   + _nbytes((1, Lk, n_head * d_k), k_p.dtype)
                   + _nbytes((1, Lk, n_head * d_v), v_p.dtype)
                   + _nbytes((1, tq, n_head * d_v), jnp.bfloat16)
                   + _nbytes((n_head, 1, tq, Lk), jnp.float32))
    scratch_bytes = _nbytes((tq, n_head * d_v), jnp.float32)
    # Grid: batch outer (K/V block reused across q tiles), q-tile inner; both
    # "parallel" so v7x's two TensorCores can shard the work (neutral on v5e/v6e).
    ctx, attn = pl.pallas_call(
        kernel,
        out_shape=(
            jax.ShapeDtypeStruct((B, Lq, n_head * d_v), jnp.bfloat16),
            jax.ShapeDtypeStruct((n_head, B, Lq, Lk), jnp.float32),
        ),
        grid=(B, Lq // tq),
        in_specs=[
            pl.BlockSpec((1, tq, n_head * d_k), lambda b, i: (b, i, 0)),
            pl.BlockSpec((1, Lk, n_head * d_k), lambda b, i: (b, 0, 0)),  # K resident per batch
            pl.BlockSpec((1, Lk, n_head * d_v), lambda b, i: (b, 0, 0)),  # V resident per batch
        ],
        out_specs=(
            pl.BlockSpec((1, tq, n_head * d_v), lambda b, i: (b, i, 0)),
            pl.BlockSpec((n_head, 1, tq, Lk), lambda b, i: (0, b, i, 0)),
        ),
        scratch_shapes=[pltpu.VMEM((tq, n_head * d_v), jnp.float32)],
        compiler_params=_compiler_params(("parallel", "parallel"),
                                         block_bytes, scratch_bytes),
    )(q_p, k_p, v_p)
    return ctx, attn


def fc_residual_layernorm(x, residual, w_fc_t, b_fc, gamma, beta, *,
                          row_tile=512):
    """x: (N, H*d_v) bf16, residual: (N, d_model) f32 -> (N, d_model) f32."""
    N, din = x.shape
    d_model = w_fc_t.shape[1]
    tm = _pick_tile(N, row_tile)
    block_bytes = (_nbytes((tm, din), x.dtype)
                   + _nbytes((tm, d_model), residual.dtype)
                   + _nbytes((din, d_model), w_fc_t.dtype)
                   + 3 * _nbytes((1, d_model), jnp.float32)
                   + _nbytes((tm, d_model), jnp.float32))
    return pl.pallas_call(
        _fc_residual_layernorm_kernel,
        out_shape=jax.ShapeDtypeStruct((N, d_model), jnp.float32),
        grid=(N // tm,),
        in_specs=[
            pl.BlockSpec((tm, din), lambda i: (i, 0)),
            pl.BlockSpec((tm, d_model), lambda i: (i, 0)),
            pl.BlockSpec((din, d_model), lambda i: (0, 0)),   # weight resident
            pl.BlockSpec((1, d_model), lambda i: (0, 0)),
            pl.BlockSpec((1, d_model), lambda i: (0, 0)),
            pl.BlockSpec((1, d_model), lambda i: (0, 0)),
        ],
        out_specs=pl.BlockSpec((tm, d_model), lambda i: (i, 0)),
        compiler_params=_compiler_params(("parallel",), block_bytes),
    )(x, residual, w_fc_t, b_fc.reshape(1, d_model),
      gamma.reshape(1, d_model), beta.reshape(1, d_model))


# ---------------------------------------------------------------------------
# Parameter construction (mirrors the PyTorch __init__; weights stored
# pre-transposed (din, dout) and pre-cast to bf16 ONCE, off the hot path).
# ---------------------------------------------------------------------------

def init_params(key, n_head, d_model, d_input_k, d_k, d_v):
    k1, k2, k3, k4 = jax.random.split(key, 4)

    def w(k, din, dout, std):
        return (jax.random.normal(k, (din, dout), jnp.float32)
                * std).astype(jnp.bfloat16)

    return {
        "w_qs_wt": w(k1, d_model, n_head * d_k, np.sqrt(2.0 / (d_model + d_k))),
        "w_qs_b": jnp.zeros((n_head * d_k,), jnp.float32),
        "w_ks_wt": w(k2, d_input_k, n_head * d_k, np.sqrt(2.0 / (d_input_k + d_k))),
        "w_ks_b": jnp.zeros((n_head * d_k,), jnp.float32),
        "w_vs_wt": w(k3, d_input_k, n_head * d_v, np.sqrt(2.0 / (d_input_k + d_v))),
        "w_vs_b": jnp.zeros((n_head * d_v,), jnp.float32),
        # xavier_normal_ for fc
        "fc_wt": w(k4, n_head * d_v, d_model, np.sqrt(2.0 / (d_model + n_head * d_v))),
        "fc_b": jnp.zeros((d_model,), jnp.float32),
        # LayerNorm(d_model)
        "ln_g": jnp.ones((d_model,), jnp.float32),
        "ln_b": jnp.zeros((d_model,), jnp.float32),
    }


# ---------------------------------------------------------------------------
# Forward pass (glue in plain JAX, hot paths in Pallas)
# ---------------------------------------------------------------------------

def multi_head_attention(params, q, k, v, *, n_head, d_k, d_v):
    sz_b, len_q, d_model = q.shape
    sz_k, len_k, _ = k.shape

    residual = q

    # Projections (row-tiled Pallas linears).  Activations stay in the natural
    # (B, L, H*d) layout; the PyTorch (H, B, L, d) permute is folded into the
    # attention BlockSpecs.  k_p / v_p are emitted bf16 (intermediates only);
    # q_p stays f32 because the module returns it.
    q_p = linear(q.reshape(sz_b * len_q, -1), params["w_qs_wt"], params["w_qs_b"],
                 out_dtype=jnp.float32)
    k_p = linear(k.reshape(sz_k * len_k, -1), params["w_ks_wt"], params["w_ks_b"],
                 out_dtype=jnp.bfloat16)
    v_p = linear(v.reshape(sz_k * len_k, -1), params["w_vs_wt"], params["w_vs_b"],
                 out_dtype=jnp.bfloat16)
    q_p = q_p.reshape(sz_b, len_q, n_head * d_k)
    k_p = k_p.reshape(sz_k, len_k, n_head * d_k)
    v_p = v_p.reshape(sz_k, len_k, n_head * d_v)

    temperature = float(np.power(d_k, 0.5))
    ctx, attn = attention_all_heads(
        q_p, k_p, v_p, n_head=n_head, d_k=d_k, d_v=d_v, temperature=temperature)

    # attn: (H, B, Lq, Lk) -> (H*B, Lq, Lk), head-major (matches PyTorch view).
    attn = attn.reshape(n_head * sz_b, len_q, len_k)

    # Returned projected q must match PyTorch's permuted view (H*B, Lq, d_k);
    # only materialized for the return value — hot path never permutes.
    q_proj = (
        q_p.reshape(sz_b, len_q, n_head, d_k)
        .transpose(2, 0, 1, 3)
        .reshape(n_head * sz_b, len_q, d_k)
    )

    # fc + dropout(identity) + residual + LayerNorm fused in one Pallas kernel.
    out = fc_residual_layernorm(
        ctx.reshape(sz_b * len_q, n_head * d_v),
        residual.reshape(sz_b * len_q, d_model),
        params["fc_wt"], params["fc_b"], params["ln_g"], params["ln_b"],
    ).reshape(sz_b, len_q, d_model)

    return out, attn, q_proj


# ---------------------------------------------------------------------------
# Pure-JAX reference mirroring the kernel's precision choices (for testing)
# ---------------------------------------------------------------------------

def _reference(params, q, k, v, *, n_head, d_k, d_v):
    sz_b, len_q, d_model = q.shape
    sz_k, len_k, _ = k.shape
    residual = q

    def lin(x, wt, b, out_dtype):
        y = jnp.dot(x.astype(jnp.bfloat16), wt,
                    preferred_element_type=jnp.float32) + b
        return y.astype(out_dtype)

    q_p = lin(q.reshape(sz_b * len_q, -1), params["w_qs_wt"], params["w_qs_b"],
              jnp.float32).reshape(sz_b, len_q, n_head, d_k)
    k_p = lin(k.reshape(sz_k * len_k, -1), params["w_ks_wt"], params["w_ks_b"],
              jnp.bfloat16).reshape(sz_k, len_k, n_head, d_k)
    v_p = lin(v.reshape(sz_k * len_k, -1), params["w_vs_wt"], params["w_vs_b"],
              jnp.bfloat16).reshape(sz_k, len_k, n_head, d_v)

    scale = 1.0 / float(np.power(d_k, 0.5))
    q_s = (q_p * scale).astype(jnp.bfloat16)
    s = jnp.einsum("bqhd,bkhd->hbqk", q_s, k_p,
                   preferred_element_type=jnp.float32)
    s_max = jnp.max(s, axis=-1, keepdims=True)
    p = jnp.exp(s - s_max)
    p = p * (1.0 / jnp.sum(p, axis=-1, keepdims=True))
    ctx = jnp.einsum("hbqk,bkhd->bqhd", p.astype(jnp.bfloat16), v_p,
                     preferred_element_type=jnp.float32).astype(jnp.bfloat16)
    ctx = ctx.reshape(sz_b * len_q, n_head * d_v)

    y = jnp.dot(ctx, params["fc_wt"],
                preferred_element_type=jnp.float32) + params["fc_b"]
    y = y.reshape(sz_b, len_q, d_model) + residual
    mean = jnp.mean(y, axis=-1, keepdims=True)
    var = jnp.mean(jnp.square(y - mean), axis=-1, keepdims=True)
    out = (y - mean) * jax.lax.rsqrt(var + 1e-5) * params["ln_g"] + params["ln_b"]

    attn = p.reshape(n_head * sz_b, len_q, len_k)
    q_proj = q_p.transpose(2, 0, 1, 3).reshape(n_head * sz_b, len_q, d_k)
    return out, attn, q_proj


# ---------------------------------------------------------------------------
# Main
# ---------------------------------------------------------------------------

if __name__ == "__main__":
    n_head = 2
    d_model = 32
    d_input_k = 16
    d_k = 8
    d_v = 8
    batch = 2
    len_q = 8
    len_k = 8

    key = jax.random.PRNGKey(0)
    kp, kq, kk, kv = jax.random.split(key, 4)

    params = init_params(kp, n_head, d_model, d_input_k, d_k, d_v)

    q_in = jax.random.normal(kq, (batch, len_q, d_model), jnp.float32)
    k_in = jax.random.normal(kk, (batch, len_k, d_input_k), jnp.float32)
    v_in = jax.random.normal(kv, (batch, len_k, d_input_k), jnp.float32)

    output, attn, q_proj = multi_head_attention(
        params, q_in, k_in, v_in, n_head=n_head, d_k=d_k, d_v=d_v)
    jax.block_until_ready((output, attn, q_proj))

    assert output.shape == (batch, len_q, d_model)
    assert attn.shape == (n_head * batch, len_q, len_k)
    assert q_proj.shape == (n_head * batch, len_q, d_k)
    assert bool(jnp.all(jnp.isfinite(output)))
    # softmax rows sum to ~1 (exact normalization in-kernel)
    assert bool(jnp.all(jnp.abs(jnp.sum(attn, axis=-1) - 1.0) < 1e-3))

    # Cross-check against a pure-JAX reference with identical precision choices.
    out_r, attn_r, q_r = _reference(params, q_in, k_in, v_in,
                                    n_head=n_head, d_k=d_k, d_v=d_v)
    assert float(jnp.max(jnp.abs(output - out_r))) < 2e-2
    assert float(jnp.max(jnp.abs(attn - attn_r))) < 1e-2
    assert float(jnp.max(jnp.abs(q_proj - q_r))) < 1e-2

    print("KERNEL_OK")
</pallas_src>

<mosaic_0001>
module attributes {stable_mosaic.version = 11 : i64} {
  func.func @_linear_kernel(%arg0: i32, %arg1: memref<16x32xf32, #tpu.memory_space<vmem>>, %arg2: memref<32x16xbf16, #tpu.memory_space<vmem>>, %arg3: memref<1x16xf32, #tpu.memory_space<vmem>>, %arg4: memref<16x16xf32, #tpu.memory_space<vmem>>) attributes {dimension_semantics = [#tpu.dimension_semantics<parallel>], iteration_bounds = array<i64: 1>, scalar_prefetch = 0 : i64, scratch_operands = 0 : i64, tpu.core_type = #tpu.core_type<tc>, window_params = [{transform_indices = @transform_0, window_bounds = array<i64: 16, 32>}, {pipeline_mode = #tpu.pipeline_mode<synchronous>, transform_indices = @transform_1, window_bounds = array<i64: 32, 16>}, {pipeline_mode = #tpu.pipeline_mode<synchronous>, transform_indices = @transform_2, window_bounds = array<i64: 1, 16>}, {transform_indices = @transform_3, window_bounds = array<i64: 16, 16>}]} {
    %c0 = arith.constant 0 : index
    %c0_0 = arith.constant 0 : index
    %0 = vector.load %arg1[%c0, %c0_0] : memref<16x32xf32, #tpu.memory_space<vmem>>, vector<16x32xf32>
    %1 = arith.truncf %0 : vector<16x32xf32> to vector<16x32xbf16>
    %c0_1 = arith.constant 0 : index
    %c0_2 = arith.constant 0 : index
    %2 = vector.load %arg2[%c0_1, %c0_2] : memref<32x16xbf16, #tpu.memory_space<vmem>>, vector<32x16xbf16>
    %cst = arith.constant dense<0.000000e+00> : vector<16x16xf32>
    %3 = tpu.matmul %1, %2, %cst {dimension_numbers = #tpu.dot_dimension_numbers<[1], [0], [0], [1], [0, 0, 1, 1], [], []>} : vector<16x32xbf16>, vector<32x16xbf16>, vector<16x16xf32> -> vector<16x16xf32>
    %c0_3 = arith.constant 0 : index
    %c0_4 = arith.constant 0 : index
    %4 = vector.load %arg3[%c0_3, %c0_4] : memref<1x16xf32, #tpu.memory_space<vmem>>, vector<1x16xf32>
    %5 = vector.broadcast %4 : vector<1x16xf32> to vector<16x16xf32>
    %6 = arith.addf %3, %5 : vector<16x16xf32>
    %c0_5 = arith.constant 0 : index
    %c0_6 = arith.constant 0 : index
    %7 = vector.load %arg4[%c0_5, %c0_6] : memref<16x16xf32, #tpu.memory_space<vmem>>, vector<16x16xf32>
    tpu.vector_store %arg4[%c0_5, %c0_6], %6 {strides = array<i32>} : memref<16x16xf32, #tpu.memory_space<vmem>>, vector<16x16xf32>,
    return
  }
  func.func @transform_0(%arg0: i32) -> (i32, i32) {
    %c0_i32 = arith.constant 0 : i32
    %c0_i32_0 = arith.constant 0 : i32
    return %arg0, %c0_i32 : i32, i32
  }
  func.func @transform_1(%arg0: i32) -> (i32, i32) {
    %c0_i32 = arith.constant 0 : i32
    %c0_i32_0 = arith.constant 0 : i32
    %c0_i32_1 = arith.constant 0 : i32
    return %c0_i32, %c0_i32_0 : i32, i32
  }
  func.func @transform_2(%arg0: i32) -> (i32, i32) {
    %c0_i32 = arith.constant 0 : i32
    %c0_i32_0 = arith.constant 0 : i32
    %c0_i32_1 = arith.constant 0 : i32
    return %c0_i32, %c0_i32_0 : i32, i32
  }
  func.func @transform_3(%arg0: i32) -> (i32, i32) {
    %c0_i32 = arith.constant 0 : i32
    %c0_i32_0 = arith.constant 0 : i32
    return %arg0, %c0_i32 : i32, i32
  }
}

</mosaic_0001>

<llo_original>
// kernel: tpu_custom_call.1
$region0: #{tpu_custom_call.1}
  #allocation0 [shape = 'u32[]', space=smem, size = 0x4, offset = 0x4, fixed_abs, tag = 'smem constant byte address 0x4 - core index']
  #allocation1 [shape = 'u32[144,128]{1,0:T(1,128)}', space=vmem, size = 0x12000, scoped, tag = 'internal scratch']
  %s0 = inlined_call_operand.vmem [shape: f32[16,32], index: 0, kind: input, shape index: {}]
  %s1 = inlined_call_operand.vmem [shape: bf16[32,16], index: 1, kind: input, shape index: {}]
  %s2 = inlined_call_operand.vmem [shape: f32[1,16], index: 2, kind: input, shape index: {}]
  %s3 = inlined_call_operand.hbm [shape: f32[16,16], index: 3, kind: output, shape index: {}]
  %s4 = sld [smem:[#allocation0]]
  $region22: #{tpu_custom_call.1} parent=0
    _
  %s6 = ssub.s32 1, %s4
  %s7 = scalar_select 0, %s6, %s4
  $region1: #{tpu_custom_call.1} parent=0
    #allocation2 [shape = 'u8[8192]{0}', space=vmem, size = 0x2000, scoped, tag = 'output window, operand 0, single buffered']
    #allocation3 [shape = 's32[1]{0}', space=sflag, size = 0x4, scoped, tag = 'scoped memory for tpu_custom_call.1']
    %8 = vsyncpa [#allocation3], 0
    // Predicated region
    $region2: #{tpu_custom_call.1} parent=1 // pred_check
      _
    $region3: #{tpu_custom_call.1} parent=1 // pred_check_branch
      %10 = sbr.rel (0) target = $region5
    $region4: #{tpu_custom_call.1} parent=1 // pred_region
      _
    $region5: #{tpu_custom_call.1} parent=1 // pred_fallthru
      _
    // Predicated region
    $region6: #{tpu_custom_call.1} parent=1 // pred_check
      _
    $region7: #{tpu_custom_call.1} parent=1 // pred_check_branch
      %12 = sbr.rel (0) target = $region9
    $region8: #{tpu_custom_call.1} parent=1 // pred_region
      _
    $region9: #{tpu_custom_call.1} parent=1 // pred_fallthru
      _
    // Predicated region
    $region10: #{tpu_custom_call.1} parent=1 // pred_check
      _
    $region11: #{tpu_custom_call.1} parent=1 // pred_check_branch
      %14 = sbr.rel (0) target = $region13
    $region12: #{tpu_custom_call.1} parent=1 // pred_region
      _
    $region13: #{tpu_custom_call.1} parent=1 // pred_fallthru
      _
    %v16 = vld [vmem:[%s0] sm:$0xff]
    %v17 = vld [vmem:[%s0 + $0x8] sm:$0xff]
    %v18 = vpack.c.bf16 %v17, %v16
    %v19 = vld [vmem:[%s1] sm:$0xf]
    %v20 = vld [vmem:[%s1 + $0x4] sm:$0xf]
    %v21 = vld [vmem:[%s1 + $0x8] sm:$0xf]
    %v22 = vld [vmem:[%s1 + $0xc] sm:$0xf]
    %v23 = vld [vmem:[%s2] sm:$0x1]
    %v25 = vlaneseq
    %v26 = vshrl.u32 %v25, 7
    %v27 = vsub.s32 0, %v26
    %v28 = vrot.slane %v23, %v27
    %v34 = vunpack.c.l.b16 %v19
    %v35 = vunpack.c.l.b16 %v20
    %v36 = vunpack.c.l.b16 %v21
    %v37 = vunpack.c.l.b16 %v22
    %v38 = vpack.c.b16 %v35, %v34
    %v39 = vpack.c.b16 %v37, %v36
    %vm42 = vcmask 261120
    %v44 = vsel %vm42, %v18, 0
    %46 = vmatprep.subr.bf16.mxu0 0
    %47 = vmatpush1.bf16.msra.mxu0 %v38
    %48 = vmatprep.subr.bf16.mxu0 0
    %49 = vmatpush1.bf16.msra.mxu0 %v39
    %50 = vmatprep.subr.bf16.mxu0 0
    %51 = vmatpush1.bf16.msra.mxu0 0
    %52 = vmatprep.subr.bf16.mxu0 0
    %53 = vmatpush1.bf16.msra.mxu0 0
    %54 = vmatprep.subr.bf16.mxu0 0
    %55 = vmatpush1.bf16.msra.mxu0 0
    %56 = vmatprep.subr.bf16.mxu0 0
    %57 = vmatpush1.bf16.msra.mxu0 0
    %58 = vmatprep.subr.bf16.mxu0 0
    %59 = vmatpush1.bf16.msra.mxu0 0
    %60 = vmatprep.subr.bf16.mxu0 0
    %61 = vmatpush1.bf16.msra.mxu0 0
    %62 = vmatprep.subr.bf16.mxu0 0
    %63 = vmatpush1.bf16.msra.mxu0 0
    %64 = vmatprep.subr.bf16.mxu0 0
    %65 = vmatpush1.bf16.msra.mxu0 0
    %66 = vmatprep.subr.bf16.mxu0 0
    %67 = vmatpush1.bf16.msra.mxu0 0
    %68 = vmatprep.subr.bf16.mxu0 0
    %69 = vmatpush1.bf16.msra.mxu0 0
    %70 = vmatprep.subr.bf16.mxu0 0
    %71 = vmatpush1.bf16.msra.mxu0 0
    %72 = vmatprep.subr.bf16.mxu0 0
    %73 = vmatpush1.bf16.msra.mxu0 0
    %74 = vmatprep.subr.bf16.mxu0 0
    %75 = vmatpush1.bf16.msra.mxu0 0
    %76 = vmatprep.subr.bf16.mxu0 0
    %77 = vmatpush1.bf16.msra.mxu0 0
    %78 = vmatprep.mubr.bf16.mxu0 0
    %79 = vmatmul.mubr.bf16.gmra.mrb[0].mxu0 %v44
    %v80 = vpop.f32.mrb[0].mxu0
    %v81 = vadd.f32 %v28, %v80
    %v82 = vpop.f32.mrb[0].mxu0
    %v83 = vpop.f32.mrb[0].mxu0
    %v84 = vadd.f32 %v28, %v83
    %v85 = vpop.f32.mrb[0].mxu0
    %86 = vdwg.mxu0
    %vm87 = vcmask 130048
    %88 = vst.msk [vmem:[#allocation2] sm:$0xff] %vm87, %v81
    %89 = vst.msk [vmem:[#allocation2 + $0x8] sm:$0xff] %vm87, %v84
    // Predicated region
    $region14: #{tpu_custom_call.1} parent=1 // pred_check
      _
    $region15: #{tpu_custom_call.1} parent=1 // pred_check_branch
      %91 = sbr.rel (0) target = $region17
    $region16: #{tpu_custom_call.1} parent=1 // pred_region
      %s93 = ssub.s32 256, 256
      %94 = vsyncadd [#allocation3], %s93
      %s95 = sshll.u32 [#allocation2], 4
      %s96 = int_to_ptr.vmem [resolvable:$true] %s95
      %101 = dma.vmem_to_hbm [thread:$0]  %s96, 256, %s3, [#allocation3], 128, 128, 8
    $region17: #{tpu_custom_call.1} parent=1 // pred_fallthru
      _
    // Predicated region
    $region18: #{tpu_custom_call.1} parent=1 // pred_check
      _
    $region19: #{tpu_custom_call.1} parent=1 // pred_check_branch
      %103 = sbr.rel (0) target = $region21
    $region20: #{tpu_custom_call.1} parent=1 // pred_region
      %104 = dma.done [#allocation3], 256
    $region21: #{tpu_custom_call.1} parent=1 // pred_fallthru
      _
    %105 = vsyncpa [#allocation3], 1

</llo_original>
